<compile_context>
chip_gen: v5e
topology: v5e:2x2
jax: 0.10.0
libtpu: 0.0.40
codegen_flags: <defaults>
</compile_context>

<pallas_src>
import jax
import jax.numpy as jnp
from jax.experimental import pallas as pl
from jax.experimental.pallas import tpu as pltpu


# ---------------------------------------------------------------------------
# Kernels
# ---------------------------------------------------------------------------
def _fused_kernel(x_ref, w_ref, b_ref, o_ref):
    """Single-K-step matmul + bias, written straight to the output tile."""
    o_ref[...] = (
        jnp.dot(x_ref[...], w_ref[...], preferred_element_type=jnp.float32)
        + b_ref[...]
    ).astype(o_ref.dtype)


def _ktiled_kernel(x_ref, w_ref, b_ref, o_ref, acc_ref):
    """K-reduction matmul; bias is folded into the accumulator init."""
    k = pl.program_id(2)

    @pl.when(k == 0)
    def _():
        acc_ref[...] = jnp.broadcast_to(b_ref[...], acc_ref.shape).astype(jnp.float32)

    acc_ref[...] += jnp.dot(
        x_ref[...], w_ref[...], preferred_element_type=jnp.float32
    )

    @pl.when(k == pl.num_programs(2) - 1)
    def _():
        o_ref[...] = acc_ref[...].astype(o_ref.dtype)


# ---------------------------------------------------------------------------
# Tile selection
# ---------------------------------------------------------------------------
def _pick_tile(dim, cap, aligns):
    """Largest legal tile <= cap: full extent if it fits, else an aligned divisor.

    `aligns` is tried in preference order (e.g. 256 for v6e/v7x MXU, then 128).
    """
    if dim <= cap:
        return dim  # full-extent block is always layout-legal
    for align in aligns:
        t = (cap // align) * align
        while t >= align:
            if dim % t == 0:
                return t
            t -= align
    return dim  # fallback: full extent (correct, may be large)


# ---------------------------------------------------------------------------
# Wrapper
# ---------------------------------------------------------------------------
def unif_layer_forward(x, weights, biases, *, tm=None, tn=None, tk=None,
                       compute_dtype=None):
    """out = x @ weights + biases, computed in a Pallas TPU kernel.

    compute_dtype: optionally cast x/W (e.g. jnp.bfloat16) before the MXU;
                   accumulation stays f32 and the output keeps x's dtype.
    """
    M, K = x.shape
    K2, N = weights.shape
    assert K == K2, "input_dim mismatch"
    assert biases.shape == (N,)
    out_dtype = x.dtype

    if compute_dtype is not None:
        x = x.astype(compute_dtype)
        weights = weights.astype(compute_dtype)

    # MXU-friendly defaults capped at 512 (stays far below VMEM limits on all
    # generations, incl. v7x's 64 MiB): tn/tk prefer 256-multiples, tm 8-mult.
    tm = _pick_tile(M, 512, (8,)) if tm is None else tm
    tn = _pick_tile(N, 512, (256, 128)) if tn is None else tn
    tk = _pick_tile(K, 512, (256, 128)) if tk is None else tk
    assert M % tm == 0 and N % tn == 0 and K % tk == 0, "tiles must divide dims"

    b2d = biases.reshape(1, N)
    k_steps = K // tk

    # Explicit per-step VMEM budget: double-buffered inputs/outputs + accumulator.
    in_itemsize = jnp.dtype(x.dtype).itemsize
    out_itemsize = jnp.dtype(out_dtype).itemsize
    vmem_bytes = (
        2 * (tm * tk + tk * tn) * in_itemsize   # x / W tiles (double-buffered)
        + 2 * tn * 4                            # bias tile
        + 2 * tm * tn * out_itemsize            # output tile
        + (tm * tn * 4 if k_steps > 1 else 0)   # f32 accumulator scratch
    )
    vmem_limit = int(max(2 * vmem_bytes + (4 << 20), 32 << 20))

    if k_steps == 1:
        # Fused single-pass path: no scratch, no predicated branches.
        return pl.pallas_call(
            _fused_kernel,
            out_shape=jax.ShapeDtypeStruct((M, N), out_dtype),
            grid=(M // tm, N // tn),
            in_specs=[
                pl.BlockSpec((tm, K), lambda i, j: (i, 0)),   # x tile
                pl.BlockSpec((K, tn), lambda i, j: (0, j)),   # W tile
                pl.BlockSpec((1, tn), lambda i, j: (0, j)),   # bias tile
            ],
            out_specs=pl.BlockSpec((tm, tn), lambda i, j: (i, j)),
            compiler_params=pltpu.CompilerParams(
                dimension_semantics=("parallel", "parallel"),
                vmem_limit_bytes=vmem_limit,
            ),
        )(x, weights, b2d)

    # K-tiled reduction path (large input_dim).
    return pl.pallas_call(
        _ktiled_kernel,
        out_shape=jax.ShapeDtypeStruct((M, N), out_dtype),
        grid=(M // tm, N // tn, k_steps),
        in_specs=[
            pl.BlockSpec((tm, tk), lambda i, j, k: (i, k)),   # x tile
            pl.BlockSpec((tk, tn), lambda i, j, k: (k, j)),   # W tile
            pl.BlockSpec((1, tn), lambda i, j, k: (0, j)),    # bias tile
        ],
        out_specs=pl.BlockSpec((tm, tn), lambda i, j, k: (i, j)),
        scratch_shapes=[pltpu.VMEM((tm, tn), jnp.float32)],
        compiler_params=pltpu.CompilerParams(
            dimension_semantics=("parallel", "parallel", "arbitrary"),
            vmem_limit_bytes=vmem_limit,
        ),
    )(x, weights, b2d)


# ---------------------------------------------------------------------------
# Demo / self-check
# ---------------------------------------------------------------------------
if __name__ == "__main__":
    key = jax.random.PRNGKey(0)
    kx, kw, kb, kx2, kw2, kb2 = jax.random.split(key, 6)

    # --- Module-consistent small shapes: batch=8, input_dim=32, output_dim=128
    batch, input_dim, output_dim = 8, 32, 128
    weights = jax.random.uniform(
        kw, (input_dim, output_dim), jnp.float32, minval=-0.01, maxval=0.01
    )
    biases = jax.random.uniform(
        kb, (output_dim,), jnp.float32, minval=-0.01, maxval=0.01
    )
    x = jax.random.normal(kx, (batch, input_dim), jnp.float32)

    out = jax.block_until_ready(unif_layer_forward(x, weights, biases))
    ref = x @ weights + biases
    assert out.shape == (batch, output_dim)
    assert jnp.allclose(out, ref, atol=1e-5, rtol=1e-5)

    # --- Also exercise the K-tiled accumulator path (forced tk < K).
    M2, K2, N2 = 16, 256, 256
    w2 = jax.random.uniform(kw2, (K2, N2), jnp.float32, minval=-0.01, maxval=0.01)
    b2 = jax.random.uniform(kb2, (N2,), jnp.float32, minval=-0.01, maxval=0.01)
    x2 = jax.random.normal(kx2, (M2, K2), jnp.float32)

    out2 = jax.block_until_ready(unif_layer_forward(x2, w2, b2, tk=128))
    ref2 = x2 @ w2 + b2
    assert jnp.allclose(out2, ref2, atol=1e-5, rtol=1e-5)

    print("KERNEL_OK")
</pallas_src>

<mosaic_0001>
module attributes {stable_mosaic.version = 11 : i64} {
  func.func @_fused_kernel(%arg0: i32, %arg1: i32, %arg2: memref<8x32xf32, #tpu.memory_space<vmem>>, %arg3: memref<32x128xf32, #tpu.memory_space<vmem>>, %arg4: memref<1x128xf32, #tpu.memory_space<vmem>>, %arg5: memref<8x128xf32, #tpu.memory_space<vmem>>) attributes {dimension_semantics = [#tpu.dimension_semantics<parallel>, #tpu.dimension_semantics<parallel>], iteration_bounds = array<i64: 1, 1>, scalar_prefetch = 0 : i64, scratch_operands = 0 : i64, tpu.core_type = #tpu.core_type<tc>, window_params = [{transform_indices = @transform_0, window_bounds = array<i64: 8, 32>}, {transform_indices = @transform_1, window_bounds = array<i64: 32, 128>}, {transform_indices = @transform_2, window_bounds = array<i64: 1, 128>}, {transform_indices = @transform_3, window_bounds = array<i64: 8, 128>}]} {
    %c0 = arith.constant 0 : index
    %c0_0 = arith.constant 0 : index
    %0 = vector.load %arg2[%c0, %c0_0] : memref<8x32xf32, #tpu.memory_space<vmem>>, vector<8x32xf32>
    %c0_1 = arith.constant 0 : index
    %c0_2 = arith.constant 0 : index
    %1 = vector.load %arg3[%c0_1, %c0_2] : memref<32x128xf32, #tpu.memory_space<vmem>>, vector<32x128xf32>
    %cst = arith.constant dense<0.000000e+00> : vector<8x128xf32>
    %2 = tpu.matmul %0, %1, %cst {dimension_numbers = #tpu.dot_dimension_numbers<[1], [0], [0], [1], [0, 0, 1, 1], [], []>} : vector<8x32xf32>, vector<32x128xf32>, vector<8x128xf32> -> vector<8x128xf32>
    %c0_3 = arith.constant 0 : index
    %c0_4 = arith.constant 0 : index
    %3 = vector.load %arg4[%c0_3, %c0_4] : memref<1x128xf32, #tpu.memory_space<vmem>>, vector<1x128xf32>
    %4 = vector.broadcast %3 : vector<1x128xf32> to vector<8x128xf32>
    %5 = arith.addf %2, %4 : vector<8x128xf32>
    %c0_5 = arith.constant 0 : index
    %c0_6 = arith.constant 0 : index
    %6 = vector.load %arg5[%c0_5, %c0_6] : memref<8x128xf32, #tpu.memory_space<vmem>>, vector<8x128xf32>
    tpu.vector_store %arg5[%c0_5, %c0_6], %5 {strides = array<i32>} : memref<8x128xf32, #tpu.memory_space<vmem>>, vector<8x128xf32>,
    return
  }
  func.func @transform_0(%arg0: i32, %arg1: i32) -> (i32, i32) {
    %c0_i32 = arith.constant 0 : i32
    %c0_i32_0 = arith.constant 0 : i32
    return %arg0, %c0_i32 : i32, i32
  }
  func.func @transform_1(%arg0: i32, %arg1: i32) -> (i32, i32) {
    %c0_i32 = arith.constant 0 : i32
    %c0_i32_0 = arith.constant 0 : i32
    return %c0_i32, %arg1 : i32, i32
  }
  func.func @transform_2(%arg0: i32, %arg1: i32) -> (i32, i32) {
    %c0_i32 = arith.constant 0 : i32
    %c0_i32_0 = arith.constant 0 : i32
    return %c0_i32, %arg1 : i32, i32
  }
  func.func @transform_3(%arg0: i32, %arg1: i32) -> (i32, i32) {
    %c0_i32 = arith.constant 0 : i32
    return %arg0, %arg1 : i32, i32
  }
}

</mosaic_0001>

<llo_original>
// kernel: tpu_custom_call.1
$region0: #{tpu_custom_call.1}
  #allocation0 [shape = 'u32[]', space=smem, size = 0x4, offset = 0x4, fixed_abs, tag = 'smem constant byte address 0x4 - core index']
  #allocation1 [shape = 'u32[72,128]{1,0:T(1,128)}', space=vmem, size = 0x9000, scoped, tag = 'internal scratch']
  %s0 = inlined_call_operand.hbm [shape: f32[8,32], index: 0, kind: input, shape index: {}]
  %s1 = inlined_call_operand.hbm [shape: f32[32,128], index: 1, kind: input, shape index: {}]
  %s2 = inlined_call_operand.vmem [shape: f32[1,128], index: 2, kind: input, shape index: {}]
  %s3 = inlined_call_operand.hbm [shape: f32[8,128], index: 3, kind: output, shape index: {}]
  %s4 = sld [smem:[#allocation0]]
  $region30: #{tpu_custom_call.1} parent=0
    _
  %s6 = ssub.s32 1, %s4
  %s7 = scalar_select 0, %s6, %s4
  $region1: #{tpu_custom_call.1} parent=0
    #allocation2 [shape = 'u8[4096]{0}', space=vmem, size = 0x1000, scoped, tag = 'input window, operand 0, single buffered']
    #allocation3 [shape = 's32[1]{0}', space=sflag, size = 0x4, scoped, tag = 'scoped memory for tpu_custom_call.1']
    #allocation4 [shape = 's32[1]{0}', space=sflag, size = 0x4, scoped, tag = 'scoped memory for tpu_custom_call.1']
    #allocation5 [shape = 'u8[16384]{0}', space=vmem, size = 0x4000, scoped, tag = 'input window, operand 1, single buffered']
    #allocation6 [shape = 's32[1]{0}', space=sflag, size = 0x4, scoped, tag = 'scoped memory for tpu_custom_call.1']
    #allocation7 [shape = 'u8[4096]{0}', space=vmem, size = 0x1000, scoped, tag = 'output window, operand 0, single buffered']
    %8 = vsyncpa [#allocation3], 0
    %9 = vsyncpa [#allocation6], 0
    %10 = vsyncpa [#allocation4], 0
    // Predicated region
    $region2: #{tpu_custom_call.1} parent=1 // pred_check
      _
    $region3: #{tpu_custom_call.1} parent=1 // pred_check_branch
      %12 = sbr.rel (0) target = $region5
    $region4: #{tpu_custom_call.1} parent=1 // pred_region
      %14 = vsyncadd [#allocation3], 0
      %s16 = sshll.u32 %s0, 4
      %s17 = int_to_ptr.hbm [resolvable:$true] %s16
      %s18 = sshll.u32 [#allocation2], 4
      %s19 = int_to_ptr.vmem [resolvable:$true] %s18
      %21 = dma.hbm_to_vmem [thread:$0]  %s17, 128, %s19, [#allocation3]
    $region5: #{tpu_custom_call.1} parent=1 // pred_fallthru
      _
    // Predicated region
    $region6: #{tpu_custom_call.1} parent=1 // pred_check
      _
    $region7: #{tpu_custom_call.1} parent=1 // pred_check_branch
      %23 = sbr.rel (0) target = $region9
    $region8: #{tpu_custom_call.1} parent=1 // pred_region
      %25 = vsyncadd [#allocation6], 0
      %s26 = sshll.u32 %s1, 4
      %s27 = int_to_ptr.hbm [resolvable:$true] %s26
      %s28 = sshll.u32 [#allocation5], 4
      %s29 = int_to_ptr.vmem [resolvable:$true] %s28
      %34 = dma.hbm_to_vmem [thread:$0]  %s27, 512, %s29, [#allocation6], 128, 128, 8
    $region9: #{tpu_custom_call.1} parent=1 // pred_fallthru
      _
    // Predicated region
    $region10: #{tpu_custom_call.1} parent=1 // pred_check
      _
    $region11: #{tpu_custom_call.1} parent=1 // pred_check_branch
      %36 = sbr.rel (0) target = $region13
    $region12: #{tpu_custom_call.1} parent=1 // pred_region
      _
    $region13: #{tpu_custom_call.1} parent=1 // pred_fallthru
      _
    // Predicated region
    $region14: #{tpu_custom_call.1} parent=1 // pred_check
      _
    $region15: #{tpu_custom_call.1} parent=1 // pred_check_branch
      %38 = sbr.rel (0) target = $region17
    $region16: #{tpu_custom_call.1} parent=1 // pred_region
      %40 = dma.done [#allocation3], 128
    $region17: #{tpu_custom_call.1} parent=1 // pred_fallthru
      _
    // Predicated region
    $region18: #{tpu_custom_call.1} parent=1 // pred_check
      _
    $region19: #{tpu_custom_call.1} parent=1 // pred_check_branch
      %42 = sbr.rel (0) target = $region21
    $region20: #{tpu_custom_call.1} parent=1 // pred_region
      %44 = dma.done [#allocation6], 512
    $region21: #{tpu_custom_call.1} parent=1 // pred_fallthru
      _
    %v45 = vld [vmem:[#allocation2] sm:$0xff]
    %v46 = vld [vmem:[#allocation5] sm:$0xff]
    %v47 = vld [vmem:[#allocation5 + $0x8] sm:$0xff]
    %v48 = vld [vmem:[#allocation5 + $0x10] sm:$0xff]
    %v49 = vld [vmem:[#allocation5 + $0x18] sm:$0xff]
    %v50 = vld [vmem:[%s2] sm:$0x1]
    %v52 = vperm.slane %v50, 0
    %vm54 = vcmask 261120
    %v56 = vsel %vm54, %v45, 0
    %58 = vmatpush.msra.mxu0 0.0
    %59 = vmatpush.msra.mxu0 0.0
    %60 = vmatpush.msra.mxu0 0.0
    %61 = vmatpush.msra.mxu0 0.0
    %62 = vmatpush.msra.mxu0 0.0
    %63 = vmatpush.msra.mxu0 0.0
    %64 = vmatpush.msra.mxu0 0.0
    %65 = vmatpush.msra.mxu0 0.0
    %66 = vmatpush.msra.mxu0 0.0
    %67 = vmatpush.msra.mxu0 0.0
    %68 = vmatpush.msra.mxu0 0.0
    %69 = vmatpush.msra.mxu0 0.0
    %70 = vmatpush.msra.mxu0 %v49
    %71 = vmatpush.msra.mxu0 %v48
    %72 = vmatpush.msra.mxu0 %v47
    %73 = vmatpush.msra.mxu0 %v46
    %74 = vmatmul.f32.gmra.mxu0 %v56
    %v75 = vpop.f32.mrf.mxu0
    %v76 = vadd.f32 %v52, %v75
    %77 = vdwg.mxu0
    %78 = vst [vmem:[#allocation7] sm:$0xff] %v76
    // Predicated region
    $region22: #{tpu_custom_call.1} parent=1 // pred_check
      _
    $region23: #{tpu_custom_call.1} parent=1 // pred_check_branch
      %80 = sbr.rel (0) target = $region25
    $region24: #{tpu_custom_call.1} parent=1 // pred_region
      %82 = vsyncadd [#allocation4], 0
      %s84 = sshll.u32 [#allocation7], 4
      %s85 = int_to_ptr.vmem [resolvable:$true] %s84
      %s86 = sshll.u32 %s3, 4
      %s87 = int_to_ptr.hbm [resolvable:$true] %s86
      %89 = dma.vmem_to_hbm [thread:$0]  %s85, 128, %s87, [#allocation4]
    $region25: #{tpu_custom_call.1} parent=1 // pred_fallthru
      _
    // Predicated region
    $region26: #{tpu_custom_call.1} parent=1 // pred_check
      _
    $region27: #{tpu_custom_call.1} parent=1 // pred_check_branch
      %91 = sbr.rel (0) target = $region29
    $region28: #{tpu_custom_call.1} parent=1 // pred_region
      %93 = dma.done [#allocation4], 128
    $region29: #{tpu_custom_call.1} parent=1 // pred_fallthru
      _
    %94 = vsyncpa [#allocation3], 1
    %95 = vsyncpa [#allocation6], 1
    %96 = vsyncpa [#allocation4], 1

</llo_original>
